<compile_context>
chip_gen: v7x
topology: tpu7x:2x2x1
jax: 0.10.0
libtpu: 0.0.40
codegen_flags: <defaults>
</compile_context>

<pallas_src>
import functools

import jax
import jax.numpy as jnp
from jax.experimental import pallas as pl
from jax.experimental.pallas import tpu as pltpu


def _round_up(x, m):
    return (x + m - 1) // m * m


def _pad2d(a, rows, cols):
    pr, pc = rows - a.shape[0], cols - a.shape[1]
    if pr == 0 and pc == 0:
        return a
    return jnp.pad(a, ((0, pr), (0, pc)))


def _physical_vmem_bytes():
    """Per-core VMEM capacity; conservative 64 MiB (v7x) if the query fails."""
    default = 64 * 1024 * 1024
    try:
        info = pltpu.get_tpu_info()
        cap = int(getattr(info, "vmem_capacity_bytes", default))
        return max(cap, 32 * 1024 * 1024)
    except Exception:  # pragma: no cover - defensive
        return default


# --------------------------------------------------------------------------
# Kernels
# --------------------------------------------------------------------------
def _ffn_kernel_resident(x_ref, w1_ref, b1_ref, w2_ref, b2_ref, o_ref):
    """Weights resident in VMEM; one token tile per grid step."""
    h = jnp.dot(x_ref[...], w1_ref[...], preferred_element_type=jnp.float32)
    h = jnp.maximum(h + b1_ref[...], 0.0)
    o = jnp.dot(h.astype(w2_ref.dtype), w2_ref[...],
                preferred_element_type=jnp.float32)
    o_ref[...] = (o + b2_ref[...]).astype(o_ref.dtype)


def _ffn_kernel_tiled_f32out(th, x_ref, w1_ref, b1_ref, w2_ref, b2_ref, o_ref):
    """Hidden dim tiled; f32 output block doubles as the accumulator."""
    j = pl.program_id(1)

    @pl.when(j == 0)
    def _():
        o_ref[...] = jnp.broadcast_to(b2_ref[...], o_ref.shape).astype(o_ref.dtype)

    off = pl.multiple_of(j * th, 128)
    h = jnp.dot(x_ref[...], w1_ref[...], preferred_element_type=jnp.float32)
    h = jnp.maximum(h + b1_ref[:, pl.ds(off, th)], 0.0)
    o_ref[...] += jnp.dot(h.astype(w2_ref.dtype), w2_ref[...],
                          preferred_element_type=jnp.float32)


def _ffn_kernel_tiled_acc(th, x_ref, w1_ref, b1_ref, w2_ref, b2_ref, o_ref,
                          acc_ref):
    """Hidden dim tiled; f32 VMEM accumulator for non-f32 outputs."""
    j = pl.program_id(1)

    @pl.when(j == 0)
    def _():
        acc_ref[...] = jnp.broadcast_to(b2_ref[...], acc_ref.shape)

    off = pl.multiple_of(j * th, 128)
    h = jnp.dot(x_ref[...], w1_ref[...], preferred_element_type=jnp.float32)
    h = jnp.maximum(h + b1_ref[:, pl.ds(off, th)], 0.0)
    acc_ref[...] += jnp.dot(h.astype(w2_ref.dtype), w2_ref[...],
                            preferred_element_type=jnp.float32)

    @pl.when(j == pl.num_programs(1) - 1)
    def _():
        o_ref[...] = acc_ref[...].astype(o_ref.dtype)


# --------------------------------------------------------------------------
# Wrapper
# --------------------------------------------------------------------------
@functools.partial(
    jax.jit, static_argnames=("block_tokens", "block_hidden", "mxu_dtype"))
def position_wise_ffn(x, w1, b1, w2, b2, *,
                      block_tokens=None,
                      block_hidden=512,
                      mxu_dtype=jnp.bfloat16):
    """x: (..., ffn_num_input) -> (..., pw_num_outputs).

    w1: (d_in, d_hidden), w2: (d_hidden, d_out)  (already transposed vs.
    torch.nn.Linear.weight), b1: (d_hidden,), b2: (d_out,).

    mxu_dtype=jnp.bfloat16 (default) feeds the MXU with bf16 operands while
    accumulating / applying bias+ReLU in f32.  mxu_dtype=None keeps full f32
    operands (bit-close to the PyTorch module).
    """
    orig_shape = x.shape
    d_in, d_hidden, d_out = orig_shape[-1], w1.shape[1], w2.shape[1]
    out_dtype = x.dtype
    out_itemsize = jnp.dtype(out_dtype).itemsize

    x2d = x.reshape(-1, d_in)
    n_tokens = x2d.shape[0]

    op_dtype = jnp.dtype(mxu_dtype) if mxu_dtype is not None else jnp.dtype(x.dtype)
    itemsize = op_dtype.itemsize
    row_mult = {8: 8, 4: 8, 2: 16, 1: 32}.get(itemsize, 8)

    # ---- generation-aware VMEM budget / limit -----------------------------
    phys = _physical_vmem_bytes()
    vmem_budget = int(0.70 * phys)
    vmem_limit = min(int(0.85 * phys), vmem_budget + (8 << 20))
    if block_tokens is None:
        block_tokens = 2048 if phys >= (96 << 20) else 1024

    # ---- lane-dense padding of all feature dims (multiples of 128) --------
    d_in_p = _round_up(d_in, 128)
    d_h_p = _round_up(d_hidden, 128)
    d_out_p = _round_up(d_out, 128)

    n_rows = _round_up(n_tokens, row_mult)
    start_tm = _round_up(min(block_tokens, n_rows), row_mult)
    floor_tm = _round_up(min(128, n_rows), row_mult)

    # ---- fast path: weights resident in VMEM -------------------------------
    def fast_fits(tm_):
        xb = 2 * tm_ * d_in_p * itemsize            # x tile (double-buffered)
        ob = 2 * tm_ * d_out_p * out_itemsize       # out tile
        wb = 2 * (d_in_p * d_h_p + d_h_p * d_out_p) * itemsize   # w1 + w2
        bb = 2 * 8 * (d_h_p + d_out_p) * 4          # f32 biases (sublane-padded)
        inter = tm_ * d_h_p * 4 + tm_ * d_out_p * 4  # f32 h + f32 output work
        return xb + ob + wb + bb + inter <= vmem_budget

    use_fast = fast_fits(floor_tm)

    if use_fast:
        tm = start_tm
        while tm > floor_tm and not fast_fits(tm):
            tm = max(floor_tm, _round_up(tm // 2, row_mult))
        th = d_h_p
        d_h_pad = d_h_p
        needs_acc = False
    else:
        # ---- tiled-hidden fallback ----------------------------------------
        needs_acc = out_dtype != jnp.float32
        th = d_h_p if d_h_p <= block_hidden else max(256, (block_hidden // 256) * 256)

        def tiled_fits(tm_, th_):
            dh_pad_ = _round_up(d_h_p, th_)
            xb = 2 * tm_ * d_in_p * itemsize
            ob = 2 * tm_ * d_out_p * out_itemsize
            wb = 2 * (d_in_p * th_ + th_ * d_out_p) * itemsize
            bb = 2 * 8 * (dh_pad_ + d_out_p) * 4
            inter = tm_ * th_ * 4
            acc = tm_ * d_out_p * 4 if needs_acc else 0
            return xb + ob + wb + bb + inter + acc <= vmem_budget

        tm = start_tm
        while not tiled_fits(tm, th):
            if tm > floor_tm:
                tm = max(floor_tm, _round_up(tm // 2, row_mult))
            elif th > 256 and (th // 2) % 128 == 0:
                th = th // 2
            elif th > 128:
                th = 128
            else:
                break  # best effort; vmem_limit still protects compilation
        d_h_pad = _round_up(d_h_p, th)

    # Let the "parallel" token axis shard across both TensorCores on v7x.
    n_pad = _round_up(n_tokens, tm)
    if n_pad // tm == 1 and tm >= 256:
        tm = _round_up(tm // 2, row_mult)
        n_pad = _round_up(n_tokens, tm)

    # ---- zero-pad operands (exactly preserves the math) --------------------
    # TODO(synk): for very large activations, drive a ragged last token tile
    # instead of materializing the token-axis pad / output slice copies.
    cast = (lambda a: a.astype(mxu_dtype)) if mxu_dtype is not None else (lambda a: a)
    x_p = _pad2d(cast(x2d), n_pad, d_in_p)
    w1_p = _pad2d(cast(w1), d_in_p, d_h_pad)
    w2_p = _pad2d(cast(w2), d_h_pad, d_out_p)
    b1_p = _pad2d(b1.reshape(1, d_hidden).astype(jnp.float32), 1, d_h_pad)
    b2_p = _pad2d(b2.reshape(1, d_out).astype(jnp.float32), 1, d_out_p)

    if use_fast:
        grid = (n_pad // tm,)
        in_specs = [
            pl.BlockSpec((tm, d_in_p), lambda i: (i, 0)),        # x tile
            pl.BlockSpec((d_in_p, d_h_pad), lambda i: (0, 0)),   # w1 resident
            pl.BlockSpec((1, d_h_pad), lambda i: (0, 0)),        # b1 resident
            pl.BlockSpec((d_h_pad, d_out_p), lambda i: (0, 0)),  # w2 resident
            pl.BlockSpec((1, d_out_p), lambda i: (0, 0)),        # b2 resident
        ]
        out_specs = pl.BlockSpec((tm, d_out_p), lambda i: (i, 0))
        scratch_shapes = []
        kernel = _ffn_kernel_resident
        dim_sem = ("parallel",)
    else:
        grid = (n_pad // tm, d_h_pad // th)
        in_specs = [
            pl.BlockSpec((tm, d_in_p), lambda i, j: (i, 0)),      # x tile
            pl.BlockSpec((d_in_p, th), lambda i, j: (0, j)),      # w1 chunk
            pl.BlockSpec((1, d_h_pad), lambda i, j: (0, 0)),      # b1 resident
            pl.BlockSpec((th, d_out_p), lambda i, j: (j, 0)),     # w2 chunk
            pl.BlockSpec((1, d_out_p), lambda i, j: (0, 0)),      # b2 resident
        ]
        out_specs = pl.BlockSpec((tm, d_out_p), lambda i, j: (i, 0))
        if needs_acc:
            scratch_shapes = [pltpu.VMEM((tm, d_out_p), jnp.float32)]
            kernel = functools.partial(_ffn_kernel_tiled_acc, th)
        else:
            scratch_shapes = []
            kernel = functools.partial(_ffn_kernel_tiled_f32out, th)
        dim_sem = ("parallel", "arbitrary")

    out_p = pl.pallas_call(
        kernel,
        out_shape=jax.ShapeDtypeStruct((n_pad, d_out_p), out_dtype),
        grid_spec=pltpu.PrefetchScalarGridSpec(
            num_scalar_prefetch=0,
            grid=grid,
            in_specs=in_specs,
            out_specs=out_specs,
            scratch_shapes=scratch_shapes,
        ),
        compiler_params=pltpu.CompilerParams(
            dimension_semantics=dim_sem,
            vmem_limit_bytes=vmem_limit,
        ),
    )(x_p, w1_p, b1_p, w2_p, b2_p)

    out2d = out_p[:n_tokens, :d_out]
    return out2d.reshape(*orig_shape[:-1], d_out)


def _init_linear_params(key, fan_in, fan_out, dtype=jnp.float32):
    """Deterministic init mimicking torch.nn.Linear (uniform +-1/sqrt(fan_in)).

    Returns W of shape (fan_in, fan_out) (already transposed vs. PyTorch) and
    b of shape (fan_out,).
    """
    kw, kb = jax.random.split(key)
    bound = 1.0 / (fan_in ** 0.5)
    w = jax.random.uniform(kw, (fan_in, fan_out), dtype, -bound, bound)
    b = jax.random.uniform(kb, (fan_out,), dtype, -bound, bound)
    return w, b


if __name__ == "__main__":
    # Module hyper-parameters (small, consistent with the PyTorch module).
    ffn_num_input = 32
    ffn_num_hiddens = 64
    pw_num_outputs = 32
    batch, seq = 2, 8

    key = jax.random.PRNGKey(0)
    kx, k1, k2 = jax.random.split(key, 3)

    # Deterministic example input: (batch, seq, ffn_num_input)
    x = jax.random.normal(kx, (batch, seq, ffn_num_input), dtype=jnp.float32)
    w1, b1 = _init_linear_params(k1, ffn_num_input, ffn_num_hiddens)
    w2, b2 = _init_linear_params(k2, ffn_num_hiddens, pw_num_outputs)

    # Pure-JAX reference of the forward semantics (f32, like PyTorch).
    ref = jnp.maximum(x @ w1 + b1, 0.0) @ w2 + b2

    # Exact f32 MXU path (bit-close to the PyTorch module).
    out_f32 = jax.block_until_ready(
        position_wise_ffn(x, w1, b1, w2, b2, mxu_dtype=None))
    assert out_f32.shape == (batch, seq, pw_num_outputs)
    assert jnp.allclose(out_f32, ref, atol=1e-5, rtol=1e-5)

    # Default fast path: bf16 MXU operands, f32 accumulation / epilogue.
    out_bf16 = jax.block_until_ready(position_wise_ffn(x, w1, b1, w2, b2))
    assert out_bf16.shape == (batch, seq, pw_num_outputs)
    assert jnp.allclose(out_bf16, ref, atol=5e-2, rtol=5e-2)

    print("KERNEL_OK")
</pallas_src>

<mosaic_0001>
module attributes {stable_mosaic.version = 11 : i64} {
  func.func @_ffn_kernel_resident(%arg0: i32, %arg1: memref<16x128xf32, #tpu.memory_space<vmem>>, %arg2: memref<128x128xf32, #tpu.memory_space<vmem>>, %arg3: memref<1x128xf32, #tpu.memory_space<vmem>>, %arg4: memref<128x128xf32, #tpu.memory_space<vmem>>, %arg5: memref<1x128xf32, #tpu.memory_space<vmem>>, %arg6: memref<16x128xf32, #tpu.memory_space<vmem>>) attributes {dimension_semantics = [#tpu.dimension_semantics<parallel>], iteration_bounds = array<i64: 1>, scalar_prefetch = 0 : i64, scratch_operands = 0 : i64, tpu.core_type = #tpu.core_type<tc>, window_params = [{transform_indices = @transform_0, window_bounds = array<i64: 16, 128>}, {pipeline_mode = #tpu.pipeline_mode<synchronous>, transform_indices = @transform_1, window_bounds = array<i64: 128, 128>}, {pipeline_mode = #tpu.pipeline_mode<synchronous>, transform_indices = @transform_2, window_bounds = array<i64: 1, 128>}, {pipeline_mode = #tpu.pipeline_mode<synchronous>, transform_indices = @transform_3, window_bounds = array<i64: 128, 128>}, {pipeline_mode = #tpu.pipeline_mode<synchronous>, transform_indices = @transform_4, window_bounds = array<i64: 1, 128>}, {transform_indices = @transform_5, window_bounds = array<i64: 16, 128>}]} {
    %c0 = arith.constant 0 : index
    %c0_0 = arith.constant 0 : index
    %0 = vector.load %arg1[%c0, %c0_0] : memref<16x128xf32, #tpu.memory_space<vmem>>, vector<16x128xf32>
    %c0_1 = arith.constant 0 : index
    %c0_2 = arith.constant 0 : index
    %1 = vector.load %arg2[%c0_1, %c0_2] : memref<128x128xf32, #tpu.memory_space<vmem>>, vector<128x128xf32>
    %cst = arith.constant dense<0.000000e+00> : vector<16x128xf32>
    %2 = tpu.matmul %0, %1, %cst {dimension_numbers = #tpu.dot_dimension_numbers<[1], [0], [0], [1], [0, 0, 1, 1], [], []>} : vector<16x128xf32>, vector<128x128xf32>, vector<16x128xf32> -> vector<16x128xf32>
    %c0_3 = arith.constant 0 : index
    %c0_4 = arith.constant 0 : index
    %3 = vector.load %arg3[%c0_3, %c0_4] : memref<1x128xf32, #tpu.memory_space<vmem>>, vector<1x128xf32>
    %4 = vector.broadcast %3 : vector<1x128xf32> to vector<16x128xf32>
    %5 = arith.addf %2, %4 : vector<16x128xf32>
    %cst_5 = arith.constant 0.000000e+00 : f32
    %6 = vector.broadcast %cst_5 : f32 to vector<16x128xf32>
    %7 = arith.maximumf %5, %6 : vector<16x128xf32>
    %c0_6 = arith.constant 0 : index
    %c0_7 = arith.constant 0 : index
    %8 = vector.load %arg4[%c0_6, %c0_7] : memref<128x128xf32, #tpu.memory_space<vmem>>, vector<128x128xf32>
    %cst_8 = arith.constant dense<0.000000e+00> : vector<16x128xf32>
    %9 = tpu.matmul %7, %8, %cst_8 {dimension_numbers = #tpu.dot_dimension_numbers<[1], [0], [0], [1], [0, 0, 1, 1], [], []>} : vector<16x128xf32>, vector<128x128xf32>, vector<16x128xf32> -> vector<16x128xf32>
    %c0_9 = arith.constant 0 : index
    %c0_10 = arith.constant 0 : index
    %10 = vector.load %arg5[%c0_9, %c0_10] : memref<1x128xf32, #tpu.memory_space<vmem>>, vector<1x128xf32>
    %11 = vector.broadcast %10 : vector<1x128xf32> to vector<16x128xf32>
    %12 = arith.addf %9, %11 : vector<16x128xf32>
    %c0_11 = arith.constant 0 : index
    %c0_12 = arith.constant 0 : index
    %13 = vector.load %arg6[%c0_11, %c0_12] : memref<16x128xf32, #tpu.memory_space<vmem>>, vector<16x128xf32>
    tpu.vector_store %arg6[%c0_11, %c0_12], %12 {strides = array<i32>} : memref<16x128xf32, #tpu.memory_space<vmem>>, vector<16x128xf32>,
    return
  }
  func.func @transform_0(%arg0: i32) -> (i32, i32) {
    %c0_i32 = arith.constant 0 : i32
    %c0_i32_0 = arith.constant 0 : i32
    return %arg0, %c0_i32 : i32, i32
  }
  func.func @transform_1(%arg0: i32) -> (i32, i32) {
    %c0_i32 = arith.constant 0 : i32
    %c0_i32_0 = arith.constant 0 : i32
    %c0_i32_1 = arith.constant 0 : i32
    return %c0_i32, %c0_i32_0 : i32, i32
  }
  func.func @transform_2(%arg0: i32) -> (i32, i32) {
    %c0_i32 = arith.constant 0 : i32
    %c0_i32_0 = arith.constant 0 : i32
    %c0_i32_1 = arith.constant 0 : i32
    return %c0_i32, %c0_i32_0 : i32, i32
  }
  func.func @transform_3(%arg0: i32) -> (i32, i32) {
    %c0_i32 = arith.constant 0 : i32
    %c0_i32_0 = arith.constant 0 : i32
    %c0_i32_1 = arith.constant 0 : i32
    return %c0_i32, %c0_i32_0 : i32, i32
  }
  func.func @transform_4(%arg0: i32) -> (i32, i32) {
    %c0_i32 = arith.constant 0 : i32
    %c0_i32_0 = arith.constant 0 : i32
    %c0_i32_1 = arith.constant 0 : i32
    return %c0_i32, %c0_i32_0 : i32, i32
  }
  func.func @transform_5(%arg0: i32) -> (i32, i32) {
    %c0_i32 = arith.constant 0 : i32
    %c0_i32_0 = arith.constant 0 : i32
    return %arg0, %c0_i32 : i32, i32
  }
}

</mosaic_0001>

<llo_original>
// kernel: position_wise_ffn.1
$region0: #{position_wise_ffn.1}
  #allocation0 [shape = 'u32[]', space=smem, size = 0x4, offset = 0x4, fixed_abs, tag = 'smem constant byte address 0x4 - core index']
  #allocation1 [shape = 'u32[144,128]{1,0:T(1,128)}', space=vmem, size = 0x12000, scoped, tag = 'internal scratch']
  %s0 = inlined_call_operand.vmem [shape: f32[16,128], index: 0, kind: input, shape index: {}]
  %s1 = inlined_call_operand.vmem [shape: f32[128,128], index: 1, kind: input, shape index: {}]
  %s2 = inlined_call_operand.vmem [shape: f32[1,128], index: 2, kind: input, shape index: {}]
  %s3 = inlined_call_operand.vmem [shape: f32[128,128], index: 3, kind: input, shape index: {}]
  %s4 = inlined_call_operand.vmem [shape: f32[1,128], index: 4, kind: input, shape index: {}]
  %s5 = inlined_call_operand.vmem [shape: f32[16,128], index: 5, kind: output, shape index: {}]
  %s6 = sld [smem:[#allocation0]]
  $region30: #{position_wise_ffn.1} parent=0
    _
  %s8 = ssub.s32 1, %s6
  %s9 = scalar_select 0, %s8, %s6
  // Predicated region
  $region2: #{position_wise_ffn.1} parent=0 // pred_check
    _
  $region3: #{position_wise_ffn.1} parent=0 // pred_check_branch
    %11 = sbr.rel (0) target = $region5
  $region4: #{position_wise_ffn.1} parent=0 // pred_region
    _
  $region5: #{position_wise_ffn.1} parent=0 // pred_fallthru
    _
  // Predicated region
  $region6: #{position_wise_ffn.1} parent=0 // pred_check
    _
  $region7: #{position_wise_ffn.1} parent=0 // pred_check_branch
    %13 = sbr.rel (0) target = $region9
  $region8: #{position_wise_ffn.1} parent=0 // pred_region
    _
  $region9: #{position_wise_ffn.1} parent=0 // pred_fallthru
    _
  // Predicated region
  $region10: #{position_wise_ffn.1} parent=0 // pred_check
    _
  $region11: #{position_wise_ffn.1} parent=0 // pred_check_branch
    %15 = sbr.rel (0) target = $region13
  $region12: #{position_wise_ffn.1} parent=0 // pred_region
    _
  $region13: #{position_wise_ffn.1} parent=0 // pred_fallthru
    _
  // Predicated region
  $region14: #{position_wise_ffn.1} parent=0 // pred_check
    _
  $region15: #{position_wise_ffn.1} parent=0 // pred_check_branch
    %17 = sbr.rel (0) target = $region17
  $region16: #{position_wise_ffn.1} parent=0 // pred_region
    _
  $region17: #{position_wise_ffn.1} parent=0 // pred_fallthru
    _
  // Predicated region
  $region18: #{position_wise_ffn.1} parent=0 // pred_check
    _
  $region19: #{position_wise_ffn.1} parent=0 // pred_check_branch
    %19 = sbr.rel (0) target = $region21
  $region20: #{position_wise_ffn.1} parent=0 // pred_region
    _
  $region21: #{position_wise_ffn.1} parent=0 // pred_fallthru
    _
  %v20 = vld [vmem:[%s0] sm:$0xff]
  %v21 = vld [vmem:[%s0 + $0x8] sm:$0xff]
  %v22 = vld [vmem:[%s1] sm:$0xff]
  %v23 = vld [vmem:[%s1 + $0x8] sm:$0xff]
  %v24 = vld [vmem:[%s1 + $0x10] sm:$0xff]
  %v25 = vld [vmem:[%s1 + $0x18] sm:$0xff]
  %v26 = vld [vmem:[%s1 + $0x20] sm:$0xff]
  %v27 = vld [vmem:[%s1 + $0x28] sm:$0xff]
  %v28 = vld [vmem:[%s1 + $0x30] sm:$0xff]
  %v29 = vld [vmem:[%s1 + $0x38] sm:$0xff]
  %v30 = vld [vmem:[%s1 + $0x40] sm:$0xff]
  %v31 = vld [vmem:[%s1 + $0x48] sm:$0xff]
  %v32 = vld [vmem:[%s1 + $0x50] sm:$0xff]
  %v33 = vld [vmem:[%s1 + $0x58] sm:$0xff]
  %v34 = vld [vmem:[%s1 + $0x60] sm:$0xff]
  %v35 = vld [vmem:[%s1 + $0x68] sm:$0xff]
  %v36 = vld [vmem:[%s1 + $0x70] sm:$0xff]
  %v37 = vld [vmem:[%s1 + $0x78] sm:$0xff]
  %v38 = vld [vmem:[%s2] sm:$0x1]
  %v40 = vlaneseq
  %v41 = vshrl.u32 %v40, 7
  %v42 = vsub.s32 0, %v41
  %v43 = vrot.slane %v38, %v42
  %45 = vmatprep.subr.mxu0 0.0
  %46 = vmatpush1.msra.mxu0 %v22
  %47 = vmatprep.subr.mxu0 0.0
  %48 = vmatpush1.msra.mxu0 %v23
  %49 = vmatprep.subr.mxu0 0.0
  %50 = vmatpush1.msra.mxu0 %v24
  %51 = vmatprep.subr.mxu0 0.0
  %52 = vmatpush1.msra.mxu0 %v25
  %53 = vmatprep.subr.mxu0 0.0
  %54 = vmatpush1.msra.mxu0 %v26
  %55 = vmatprep.subr.mxu0 0.0
  %56 = vmatpush1.msra.mxu0 %v27
  %57 = vmatprep.subr.mxu0 0.0
  %58 = vmatpush1.msra.mxu0 %v28
  %59 = vmatprep.subr.mxu0 0.0
  %60 = vmatpush1.msra.mxu0 %v29
  %61 = vmatprep.subr.mxu0 0.0
  %62 = vmatpush1.msra.mxu0 %v30
  %63 = vmatprep.subr.mxu0 0.0
  %64 = vmatpush1.msra.mxu0 %v31
  %65 = vmatprep.subr.mxu0 0.0
  %66 = vmatpush1.msra.mxu0 %v32
  %67 = vmatprep.subr.mxu0 0.0
  %68 = vmatpush1.msra.mxu0 %v33
  %69 = vmatprep.subr.mxu0 0.0
  %70 = vmatpush1.msra.mxu0 %v34
  %71 = vmatprep.subr.mxu0 0.0
  %72 = vmatpush1.msra.mxu0 %v35
  %73 = vmatprep.subr.mxu0 0.0
  %74 = vmatpush1.msra.mxu0 %v36
  %75 = vmatprep.subr.mxu0 0.0
  %76 = vmatpush1.msra.mxu0 %v37
  %77 = vmatprep.subr.mxu0 0.0
  %78 = vmatpush1.msra.mxu0 0.0
  %79 = vmatprep.subr.mxu0 0.0
  %80 = vmatpush1.msra.mxu0 0.0
  %81 = vmatprep.subr.mxu0 0.0
  %82 = vmatpush1.msra.mxu0 0.0
  %83 = vmatprep.subr.mxu0 0.0
  %84 = vmatpush1.msra.mxu0 0.0
  %85 = vmatprep.subr.mxu0 0.0
  %86 = vmatpush1.msra.mxu0 0.0
  %87 = vmatprep.subr.mxu0 0.0
  %88 = vmatpush1.msra.mxu0 0.0
  %89 = vmatprep.subr.mxu0 0.0
  %90 = vmatpush1.msra.mxu0 0.0
  %91 = vmatprep.subr.mxu0 0.0
  %92 = vmatpush1.msra.mxu0 0.0
  %93 = vmatprep.subr.mxu0 0.0
  %94 = vmatpush1.msra.mxu0 0.0
  %95 = vmatprep.subr.mxu0 0.0
  %96 = vmatpush1.msra.mxu0 0.0
  %97 = vmatprep.subr.mxu0 0.0
  %98 = vmatpush1.msra.mxu0 0.0
  %99 = vmatprep.subr.mxu0 0.0
  %100 = vmatpush1.msra.mxu0 0.0
  %101 = vmatprep.subr.mxu0 0.0
  %102 = vmatpush1.msra.mxu0 0.0
  %103 = vmatprep.subr.mxu0 0.0
  %104 = vmatpush1.msra.mxu0 0.0
  %105 = vmatprep.subr.mxu0 0.0
  %106 = vmatpush1.msra.mxu0 0.0
  %107 = vmatprep.subr.mxu0 0.0
  %108 = vmatpush1.msra.mxu0 0.0
  %109 = vmatprep.mubr.f32.mxu0 0.0
  %110 = vmatmul.mubr.f32.gmra.mrb[0].mxu0 %v20
  %v111 = vpop.f32.mrb[0].mxu0
  %v112 = vadd.f32 %v43, %v111
  %v113 = vpop.f32.mrb[0].mxu0
  %114 = vmatprep.mubr.f32.mxu0 0.0
  %115 = vmatmul.mubr.f32.gmra.mrb[0].mxu0 %v21
  %v116 = vpop.f32.mrb[0].mxu0
  %v117 = vadd.f32 %v43, %v116
  %v118 = vpop.f32.mrb[0].mxu0
  %119 = vdwg.mxu0
  %v120 = vmax.f32 %v112, 0.0
  %v121 = vmax.f32 %v117, 0.0
  %v122 = vld [vmem:[%s3] sm:$0xff]
  %v123 = vld [vmem:[%s3 + $0x8] sm:$0xff]
  %v124 = vld [vmem:[%s3 + $0x10] sm:$0xff]
  %v125 = vld [vmem:[%s3 + $0x18] sm:$0xff]
  %v126 = vld [vmem:[%s3 + $0x20] sm:$0xff]
  %v127 = vld [vmem:[%s3 + $0x28] sm:$0xff]
  %v128 = vld [vmem:[%s3 + $0x30] sm:$0xff]
  %v129 = vld [vmem:[%s3 + $0x38] sm:$0xff]
  %v130 = vld [vmem:[%s3 + $0x40] sm:$0xff]
  %v131 = vld [vmem:[%s3 + $0x48] sm:$0xff]
  %v132 = vld [vmem:[%s3 + $0x50] sm:$0xff]
  %v133 = vld [vmem:[%s3 + $0x58] sm:$0xff]
  %v134 = vld [vmem:[%s3 + $0x60] sm:$0xff]
  %v135 = vld [vmem:[%s3 + $0x68] sm:$0xff]
  %v136 = vld [vmem:[%s3 + $0x70] sm:$0xff]
  %v137 = vld [vmem:[%s3 + $0x78] sm:$0xff]
  %v138 = vld [vmem:[%s4] sm:$0x1]
  %v140 = vlaneseq
  %v141 = vshrl.u32 %v140, 7
  %v142 = vsub.s32 0, %v141
  %v143 = vrot.slane %v138, %v142
  %145 = vmatprep.subr.mxu0 0.0
  %146 = vmatpush1.msra.mxu0 %v122
  %147 = vmatprep.subr.mxu0 0.0
  %148 = vmatpush1.msra.mxu0 %v123
  %149 = vmatprep.subr.mxu0 0.0
  %150 = vmatpush1.msra.mxu0 %v124
  %151 = vmatprep.subr.mxu0 0.0
  %152 = vmatpush1.msra.mxu0 %v125
  %153 = vmatprep.subr.mxu0 0.0
  %154 = vmatpush1.msra.mxu0 %v126
  %155 = vmatprep.subr.mxu0 0.0
  %156 = vmatpush1.msra.mxu0 %v127
  %157 = vmatprep.subr.mxu0 0.0
  %158 = vmatpush1.msra.mxu0 %v128
  %159 = vmatprep.subr.mxu0 0.0
  %160 = vmatpush1.msra.mxu0 %v129
  %161 = vmatprep.subr.mxu0 0.0
  %162 = vmatpush1.msra.mxu0 %v130
  %163 = vmatprep.subr.mxu0 0.0
  %164 = vmatpush1.msra.mxu0 %v131
  %165 = vmatprep.subr.mxu0 0.0
  %166 = vmatpush1.msra.mxu0 %v132
  %167 = vmatprep.subr.mxu0 0.0
  %168 = vmatpush1.msra.mxu0 %v133
  %169 = vmatprep.subr.mxu0 0.0
  %170 = vmatpush1.msra.mxu0 %v134
  %171 = vmatprep.subr.mxu0 0.0
  %172 = vmatpush1.msra.mxu0 %v135
  %173 = vmatprep.subr.mxu0 0.0
  %174 = vmatpush1.msra.mxu0 %v136
  %175 = vmatprep.subr.mxu0 0.0
  %176 = vmatpush1.msra.mxu0 %v137
  %177 = vmatprep.subr.mxu0 0.0
  %178 = vmatpush1.msra.mxu0 0.0
  %179 = vmatprep.subr.mxu0 0.0
  %180 = vmatpush1.msra.mxu0 0.0
  %181 = vmatprep.subr.mxu0 0.0
  %182 = vmatpush1.msra.mxu0 0.0
  %183 = vmatprep.subr.mxu0 0.0
  %184 = vmatpush1.msra.mxu0 0.0
  %185 = vmatprep.subr.mxu0 0.0
  %186 = vmatpush1.msra.mxu0 0.0
  %187 = vmatprep.subr.mxu0 0.0
  %188 = vmatpush1.msra.mxu0 0.0
  %189 = vmatprep.subr.mxu0 0.0
  %190 = vmatpush1.msra.mxu0 0.0
  %191 = vmatprep.subr.mxu0 0.0
  %192 = vmatpush1.msra.mxu0 0.0
  %193 = vmatprep.subr.mxu0 0.0
  %194 = vmatpush1.msra.mxu0 0.0
  %195 = vmatprep.subr.mxu0 0.0
  %196 = vmatpush1.msra.mxu0 0.0
  %197 = vmatprep.subr.mxu0 0.0
  %198 = vmatpush1.msra.mxu0 0.0
  %199 = vmatprep.subr.mxu0 0.0
  %200 = vmatpush1.msra.mxu0 0.0
  %201 = vmatprep.subr.mxu0 0.0
  %202 = vmatpush1.msra.mxu0 0.0
  %203 = vmatprep.subr.mxu0 0.0
  %204 = vmatpush1.msra.mxu0 0.0
  %205 = vmatprep.subr.mxu0 0.0
  %206 = vmatpush1.msra.mxu0 0.0
  %207 = vmatprep.subr.mxu0 0.0
  %208 = vmatpush1.msra.mxu0 0.0
  %209 = vmatprep.mubr.f32.mxu0 0.0
  %210 = vmatmul.mubr.f32.gmra.mrb[0].mxu0 %v120
  %v211 = vpop.f32.mrb[0].mxu0
  %v212 = vadd.f32 %v143, %v211
  %v213 = vpop.f32.mrb[0].mxu0
  %214 = vmatprep.mubr.f32.mxu0 0.0
  %215 = vmatmul.mubr.f32.gmra.mrb[0].mxu0 %v121
  %v216 = vpop.f32.mrb[0].mxu0
  %v217 = vadd.f32 %v143, %v216
  %v218 = vpop.f32.mrb[0].mxu0
  %219 = vdwg.mxu0
  %220 = vst [vmem:[%s5] sm:$0xff] %v212
  %221 = vst [vmem:[%s5 + $0x8] sm:$0xff] %v217
  // Predicated region
  $region22: #{position_wise_ffn.1} parent=0 // pred_check
    _
  $region23: #{position_wise_ffn.1} parent=0 // pred_check_branch
    %223 = sbr.rel (0) target = $region25
  $region24: #{position_wise_ffn.1} parent=0 // pred_region
    _
  $region25: #{position_wise_ffn.1} parent=0 // pred_fallthru
    _
  // Predicated region
  $region26: #{position_wise_ffn.1} parent=0 // pred_check
    _
  $region27: #{position_wise_ffn.1} parent=0 // pred_check_branch
    %225 = sbr.rel (0) target = $region29
  $region28: #{position_wise_ffn.1} parent=0 // pred_region
    _
  $region29: #{position_wise_ffn.1} parent=0 // pred_fallthru
    _

</llo_original>
